<compile_context>
chip_gen: v5e
topology: v5e:2x2
jax: 0.10.0
libtpu: 0.0.40
codegen_flags: <defaults>
</compile_context>

<pallas_src>
import jax
import jax.numpy as jnp
from jax.experimental import pallas as pl
from jax.experimental.pallas import tpu as pltpu

N_EMBD = 64          # C
NUM_HEADS = 4        # H
HEAD_SIZE = 16       # hs  (H * hs == C so proj is (C, C))
SEQ_LEN = 8          # T
BATCH = 2            # B

R = NUM_HEADS * BATCH * SEQ_LEN      # 64 stacked rows, ordered (head, batch, token)
KW = NUM_HEADS * N_EMBD              # 256: contraction width of the fused input matmul
OUT_W = 2 * N_EMBD                   # 128: lane-dense (zero-padded) output width
QKV_W = OUT_W + 2 * HEAD_SIZE        # 160: packed [proj-values | q | k] width


def mha_kernel(x_ref, w_ref, mask_ref, bias_ref, o_ref):
    # x_ref   : (R, KW)      bf16  block-diag-replicated inputs, row = (head, batch, token)
    # w_ref   : (KW, QKV_W)  bf16  [Wv@Wp_pad | Wq*C**-0.5 | Wk]; head-h rows at h*C:(h+1)*C
    # mask_ref: (R, R)       f32   additive mask: 0 inside each (head,batch) 8x8 block, -1e30 off
    # bias_ref: (1, OUT_W)   f32   projection bias zero-padded to 128 lanes
    # o_ref   : (B*T, OUT_W) f32   lanes [:64] = y, lanes [64:] = 0 (lane-dense store)
    hs = HEAD_SIZE
    BT = BATCH * SEQ_LEN

    # 1) one fused MXU matmul: projected values + pre-scaled queries + keys for all rows
    qkv = jnp.dot(x_ref[...], w_ref[...], preferred_element_type=jnp.float32)    # (R, 160) f32

    vp = qkv[:, :OUT_W].astype(jnp.bfloat16)               # (R, 128) value @ proj (padded)
    q = qkv[:, OUT_W:OUT_W + hs].astype(jnp.bfloat16)       # (R, 16)  pre-scaled queries
    k = qkv[:, OUT_W + hs:].astype(jnp.bfloat16)            # (R, 16)  keys

    # 2) all (head,batch) score blocks in one matmul; contract hs of both operands (no k.T)
    s = jax.lax.dot_general(q, k, (((1,), (1,)), ((), ())),
                            preferred_element_type=jnp.float32)                  # (R, R)
    s = s + mask_ref[...]                                    # softmax stays inside each block

    # numerically stable softmax (f32); divide replaced by EUP approx reciprocal
    m = jnp.max(s, axis=-1, keepdims=True)
    p = jnp.exp(s - m)
    p = p * pl.reciprocal(jnp.sum(p, axis=-1, keepdims=True), approx=True)
    # dropout(wei): identity in eval mode

    # 3) probs @ projected values -> per-head contributions to the projected output
    z = jnp.dot(p.astype(jnp.bfloat16), vp, preferred_element_type=jnp.float32)  # (R, 128)

    # finish the output projection: sum the NUM_HEADS row blocks (head-major stacking) + bias
    y = bias_ref[...]                                        # (1, 128), broadcasts
    for h in range(NUM_HEADS):                               # static, fully unrolled
        y = y + z[h * BT:(h + 1) * BT, :]
    # dropout(proj(out)): identity in eval mode
    o_ref[...] = y                                           # single unmasked (16,128) store


def multi_head_attention(x, wq, wk, wv, wp_t, bp):
    """x: (B,T,C); wq/wk/wv: (C, H*hs) packed per head (input-major); wp_t: (C,C) = proj.weight.T;
    bp: (1,C) proj bias. Returns (B,T,C)."""
    B, T, C = x.shape
    H, hs = NUM_HEADS, HEAD_SIZE

    # ---- static weight re-packing (constants; free layout plumbing) ----
    def stack_heads(w):                          # (C, H*hs) -> (H*C, hs); head-h rows at h*C
        return w.reshape(C, H, hs).transpose(1, 0, 2).reshape(H * C, hs)

    scale = C ** (-0.5)                          # reference scales by n_embd (=C), not head_size
    wq_stk = stack_heads(wq) * scale             # fold the score scale into the query weights
    wk_stk = stack_heads(wk)
    wv_stk = stack_heads(wv)
    wp_pad = jnp.concatenate([wp_t, jnp.zeros((C, OUT_W - C), wp_t.dtype)], axis=1)      # (C, 128)
    # fold the output projection into the value weights, per head
    wvp_stk = jnp.concatenate(
        [wv_stk[h * C:(h + 1) * C, :] @ wp_pad[h * hs:(h + 1) * hs, :] for h in range(H)],
        axis=0)                                                                           # (H*C, 128)
    w_stk = jnp.concatenate([wvp_stk, wq_stk, wk_stk], axis=1).astype(jnp.bfloat16)       # (256, 160)

    bias_pad = jnp.concatenate([bp, jnp.zeros((1, OUT_W - C), bp.dtype)], axis=1)         # (1, 128)

    # additive block-diagonal mask: softmax only mixes tokens of the same (head, batch) block
    blk = jnp.arange(R) // SEQ_LEN
    attn_mask = jnp.where(blk[:, None] == blk[None, :], 0.0, -1e30).astype(jnp.float32)   # (64, 64)

    # ---- input layout plumbing: row block h multiplies only head-h weight rows ----
    x2d = x.reshape(B * T, C)
    x_blk = jnp.kron(jnp.eye(H, dtype=x.dtype), x2d).astype(jnp.bfloat16)                 # (64, 256)

    flops = 2 * (R * KW * QKV_W + R * hs * R + R * R * OUT_W)
    bytes_accessed = (x_blk.size * 2 + w_stk.size * 2 + attn_mask.size * 4
                      + bias_pad.size * 4 + B * T * OUT_W * 4)

    y_wide = pl.pallas_call(
        mha_kernel,
        out_shape=jax.ShapeDtypeStruct((B * T, OUT_W), jnp.float32),
        grid_spec=pltpu.PrefetchScalarGridSpec(
            num_scalar_prefetch=0,
            grid=(1,),                                        # tiny problem: single invocation
            in_specs=[
                pl.BlockSpec((R, KW), lambda i: (0, 0)),      # block-diag-replicated x
                pl.BlockSpec((KW, QKV_W), lambda i: (0, 0)),  # packed [Wv@Wp | Wq | Wk]
                pl.BlockSpec((R, R), lambda i: (0, 0)),       # additive block mask
                pl.BlockSpec((1, OUT_W), lambda i: (0, 0)),   # padded proj bias
            ],
            out_specs=pl.BlockSpec((B * T, OUT_W), lambda i: (0, 0)),
        ),
        compiler_params=pltpu.CompilerParams(
            dimension_semantics=("arbitrary",)),
        cost_estimate=pl.CostEstimate(flops=flops, transcendentals=R * R,
                                      bytes_accessed=bytes_accessed),
    )(x_blk, w_stk, attn_mask, bias_pad)

    return y_wide[:, :C].reshape(B, T, C)


def reference_mha(x, wq, wk, wv, wp_t, bp):
    # pure-JAX f32 reference mirroring the PyTorch module (eval mode)
    B, T, C = x.shape
    outs = []
    for h in range(NUM_HEADS):
        lo = h * HEAD_SIZE
        q = x @ wq[:, lo:lo + HEAD_SIZE]
        k = x @ wk[:, lo:lo + HEAD_SIZE]
        v = x @ wv[:, lo:lo + HEAD_SIZE]
        wei = (q @ jnp.swapaxes(k, -2, -1)) * (C ** -0.5)
        wei = jax.nn.softmax(wei, axis=-1)
        outs.append(wei @ v)
    out = jnp.concatenate(outs, axis=-1)
    return out @ wp_t + bp[0]


if __name__ == "__main__":
    key = jax.random.PRNGKey(0)
    kx, kq, kk, kv, kp, kb = jax.random.split(key, 6)

    x = jax.random.normal(kx, (BATCH, SEQ_LEN, N_EMBD), dtype=jnp.float32)

    # Deterministic synthetic parameters (nn.Linear-like scale), already transposed to
    # (in_features, out_features); per-head QKV weights packed along the output axis.
    scale = 1.0 / jnp.sqrt(N_EMBD)
    wq = jax.random.uniform(kq, (N_EMBD, NUM_HEADS * HEAD_SIZE), jnp.float32, -scale, scale)
    wk = jax.random.uniform(kk, (N_EMBD, NUM_HEADS * HEAD_SIZE), jnp.float32, -scale, scale)
    wv = jax.random.uniform(kv, (N_EMBD, NUM_HEADS * HEAD_SIZE), jnp.float32, -scale, scale)
    wp_t = jax.random.uniform(kp, (N_EMBD, N_EMBD), jnp.float32, -scale, scale)  # proj.weight.T
    bp = jax.random.uniform(kb, (1, N_EMBD), jnp.float32, -scale, scale)         # proj.bias

    y = multi_head_attention(x, wq, wk, wv, wp_t, bp)
    y = jax.block_until_ready(y)

    y_ref = reference_mha(x, wq, wk, wv, wp_t, bp)
    # tolerance accounts for bf16 MXU operands (f32 accumulation) + approx EUP reciprocal
    assert jnp.allclose(y, y_ref, atol=2e-2, rtol=2e-2), "mismatch vs reference"

    print("KERNEL_OK")
</pallas_src>

<mosaic_0001>
module attributes {stable_mosaic.version = 11 : i64} {
  func.func @mha_kernel(%arg0: i32, %arg1: memref<64x256xbf16, #tpu.memory_space<vmem>>, %arg2: memref<256x160xbf16, #tpu.memory_space<vmem>>, %arg3: memref<64x64xf32, #tpu.memory_space<vmem>>, %arg4: memref<1x128xf32, #tpu.memory_space<vmem>>, %arg5: memref<16x128xf32, #tpu.memory_space<vmem>>) attributes {dimension_semantics = [#tpu.dimension_semantics<arbitrary>], iteration_bounds = array<i64: 1>, scalar_prefetch = 0 : i64, scratch_operands = 0 : i64, tpu.core_type = #tpu.core_type<tc>, window_params = [{pipeline_mode = #tpu.pipeline_mode<synchronous>, transform_indices = @transform_0, window_bounds = array<i64: 64, 256>}, {pipeline_mode = #tpu.pipeline_mode<synchronous>, transform_indices = @transform_1, window_bounds = array<i64: 256, 160>}, {pipeline_mode = #tpu.pipeline_mode<synchronous>, transform_indices = @transform_2, window_bounds = array<i64: 64, 64>}, {pipeline_mode = #tpu.pipeline_mode<synchronous>, transform_indices = @transform_3, window_bounds = array<i64: 1, 128>}, {pipeline_mode = #tpu.pipeline_mode<synchronous>, transform_indices = @transform_4, window_bounds = array<i64: 16, 128>}]} {
    %c0 = arith.constant 0 : index
    %c0_0 = arith.constant 0 : index
    %0 = vector.load %arg1[%c0, %c0_0] : memref<64x256xbf16, #tpu.memory_space<vmem>>, vector<64x256xbf16>
    %c0_1 = arith.constant 0 : index
    %c0_2 = arith.constant 0 : index
    %1 = vector.load %arg2[%c0_1, %c0_2] : memref<256x160xbf16, #tpu.memory_space<vmem>>, vector<256x160xbf16>
    %cst = arith.constant dense<0.000000e+00> : vector<64x160xf32>
    %2 = tpu.matmul %0, %1, %cst {dimension_numbers = #tpu.dot_dimension_numbers<[1], [0], [0], [1], [0, 0, 1, 1], [], []>} : vector<64x256xbf16>, vector<256x160xbf16>, vector<64x160xf32> -> vector<64x160xf32>
    %3 = vector.extract_strided_slice %2 {offsets = [0, 0], sizes = [64, 128], strides = [1, 1]} : vector<64x160xf32> to vector<64x128xf32>
    %4 = arith.truncf %3 : vector<64x128xf32> to vector<64x128xbf16>
    %5 = vector.extract_strided_slice %2 {offsets = [0, 128], sizes = [64, 16], strides = [1, 1]} : vector<64x160xf32> to vector<64x16xf32>
    %6 = arith.truncf %5 : vector<64x16xf32> to vector<64x16xbf16>
    %7 = vector.extract_strided_slice %2 {offsets = [0, 144], sizes = [64, 16], strides = [1, 1]} : vector<64x160xf32> to vector<64x16xf32>
    %8 = arith.truncf %7 : vector<64x16xf32> to vector<64x16xbf16>
    %cst_3 = arith.constant dense<0.000000e+00> : vector<64x64xf32>
    %9 = tpu.matmul %6, %8, %cst_3 {dimension_numbers = #tpu.dot_dimension_numbers<[1], [1], [0], [0], [0, 0, 1, 0], [], []>} : vector<64x16xbf16>, vector<64x16xbf16>, vector<64x64xf32> -> vector<64x64xf32>
    %c0_4 = arith.constant 0 : index
    %c0_5 = arith.constant 0 : index
    %10 = vector.load %arg3[%c0_4, %c0_5] : memref<64x64xf32, #tpu.memory_space<vmem>>, vector<64x64xf32>
    %11 = arith.addf %9, %10 : vector<64x64xf32>
    %cst_6 = arith.constant dense<0xFF800000> : vector<64xf32>
    %12 = vector.multi_reduction <maximumf>, %11, %cst_6 [1] : vector<64x64xf32> to vector<64xf32>
    %13 = vector.shape_cast %12 : vector<64xf32> to vector<64x1xf32>
    %14 = vector.broadcast %13 : vector<64x1xf32> to vector<64x64xf32>
    %15 = arith.subf %11, %14 : vector<64x64xf32>
    %16 = math.exp %15 : vector<64x64xf32>
    %cst_7 = arith.constant dense<0.000000e+00> : vector<64xf32>
    %17 = vector.multi_reduction <add>, %16, %cst_7 [1] : vector<64x64xf32> to vector<64xf32>
    %18 = vector.shape_cast %17 : vector<64xf32> to vector<64x1xf32>
    %19 = tpu.reciprocal %18 {approx = true} : vector<64x1xf32> -> vector<64x1xf32>
    %20 = vector.broadcast %19 : vector<64x1xf32> to vector<64x64xf32>
    %21 = arith.mulf %16, %20 : vector<64x64xf32>
    %22 = arith.truncf %21 : vector<64x64xf32> to vector<64x64xbf16>
    %cst_8 = arith.constant dense<0.000000e+00> : vector<64x128xf32>
    %23 = tpu.matmul %22, %4, %cst_8 {dimension_numbers = #tpu.dot_dimension_numbers<[1], [0], [0], [1], [0, 0, 1, 1], [], []>} : vector<64x64xbf16>, vector<64x128xbf16>, vector<64x128xf32> -> vector<64x128xf32>
    %c0_9 = arith.constant 0 : index
    %c0_10 = arith.constant 0 : index
    %24 = vector.load %arg4[%c0_9, %c0_10] : memref<1x128xf32, #tpu.memory_space<vmem>>, vector<1x128xf32>
    %25 = vector.extract_strided_slice %23 {offsets = [0, 0], sizes = [16, 128], strides = [1, 1]} : vector<64x128xf32> to vector<16x128xf32>
    %26 = vector.broadcast %24 : vector<1x128xf32> to vector<16x128xf32>
    %27 = arith.addf %26, %25 : vector<16x128xf32>
    %28 = vector.extract_strided_slice %23 {offsets = [16, 0], sizes = [16, 128], strides = [1, 1]} : vector<64x128xf32> to vector<16x128xf32>
    %29 = arith.addf %27, %28 : vector<16x128xf32>
    %30 = vector.extract_strided_slice %23 {offsets = [32, 0], sizes = [16, 128], strides = [1, 1]} : vector<64x128xf32> to vector<16x128xf32>
    %31 = arith.addf %29, %30 : vector<16x128xf32>
    %32 = vector.extract_strided_slice %23 {offsets = [48, 0], sizes = [16, 128], strides = [1, 1]} : vector<64x128xf32> to vector<16x128xf32>
    %33 = arith.addf %31, %32 : vector<16x128xf32>
    %c0_11 = arith.constant 0 : index
    %c0_12 = arith.constant 0 : index
    %34 = vector.load %arg5[%c0_11, %c0_12] : memref<16x128xf32, #tpu.memory_space<vmem>>, vector<16x128xf32>
    tpu.vector_store %arg5[%c0_11, %c0_12], %33 {strides = array<i32>} : memref<16x128xf32, #tpu.memory_space<vmem>>, vector<16x128xf32>,
    return
  }
  func.func @transform_0(%arg0: i32) -> (i32, i32) {
    %c0_i32 = arith.constant 0 : i32
    %c0_i32_0 = arith.constant 0 : i32
    %c0_i32_1 = arith.constant 0 : i32
    return %c0_i32, %c0_i32_0 : i32, i32
  }
  func.func @transform_1(%arg0: i32) -> (i32, i32) {
    %c0_i32 = arith.constant 0 : i32
    %c0_i32_0 = arith.constant 0 : i32
    %c0_i32_1 = arith.constant 0 : i32
    return %c0_i32, %c0_i32_0 : i32, i32
  }
  func.func @transform_2(%arg0: i32) -> (i32, i32) {
    %c0_i32 = arith.constant 0 : i32
    %c0_i32_0 = arith.constant 0 : i32
    %c0_i32_1 = arith.constant 0 : i32
    return %c0_i32, %c0_i32_0 : i32, i32
  }
  func.func @transform_3(%arg0: i32) -> (i32, i32) {
    %c0_i32 = arith.constant 0 : i32
    %c0_i32_0 = arith.constant 0 : i32
    %c0_i32_1 = arith.constant 0 : i32
    return %c0_i32, %c0_i32_0 : i32, i32
  }
  func.func @transform_4(%arg0: i32) -> (i32, i32) {
    %c0_i32 = arith.constant 0 : i32
    %c0_i32_0 = arith.constant 0 : i32
    %c0_i32_1 = arith.constant 0 : i32
    return %c0_i32, %c0_i32_0 : i32, i32
  }
}

</mosaic_0001>

<llo_original>
// kernel: tpu_custom_call.1
$region0: #{tpu_custom_call.1}
  #allocation0 [shape = 'u32[]', space=smem, size = 0x4, offset = 0x4, fixed_abs, tag = 'smem constant byte address 0x4 - core index']
  #allocation1 [shape = 'u32[72,128]{1,0:T(1,128)}', space=vmem, size = 0x9000, scoped, tag = 'internal scratch']
  %s0 = inlined_call_operand.vmem [shape: bf16[64,256], index: 0, kind: input, shape index: {}]
  %s1 = inlined_call_operand.vmem [shape: bf16[256,160], index: 1, kind: input, shape index: {}]
  %s2 = inlined_call_operand.vmem [shape: f32[64,64], index: 2, kind: input, shape index: {}]
  %s3 = inlined_call_operand.vmem [shape: f32[1,128], index: 3, kind: input, shape index: {}]
  %s4 = inlined_call_operand.hbm [shape: f32[16,128], index: 4, kind: output, shape index: {}]
  %s5 = sld [smem:[#allocation0]]
  $region26: #{tpu_custom_call.1} parent=0
    _
  %s7 = ssub.s32 1, %s5
  %s8 = scalar_select 0, %s7, %s5
  $region1: #{tpu_custom_call.1} parent=0
    #allocation2 [shape = 'u8[8192]{0}', space=vmem, size = 0x2000, scoped, tag = 'output window, operand 0, single buffered']
    #allocation3 [shape = 's32[1]{0}', space=sflag, size = 0x4, scoped, tag = 'scoped memory for tpu_custom_call.1']
    %9 = vsyncpa [#allocation3], 0
    // Predicated region
    $region2: #{tpu_custom_call.1} parent=1 // pred_check
      _
    $region3: #{tpu_custom_call.1} parent=1 // pred_check_branch
      %11 = sbr.rel (0) target = $region5
    $region4: #{tpu_custom_call.1} parent=1 // pred_region
      _
    $region5: #{tpu_custom_call.1} parent=1 // pred_fallthru
      _
    // Predicated region
    $region6: #{tpu_custom_call.1} parent=1 // pred_check
      _
    $region7: #{tpu_custom_call.1} parent=1 // pred_check_branch
      %13 = sbr.rel (0) target = $region9
    $region8: #{tpu_custom_call.1} parent=1 // pred_region
      _
    $region9: #{tpu_custom_call.1} parent=1 // pred_fallthru
      _
    // Predicated region
    $region10: #{tpu_custom_call.1} parent=1 // pred_check
      _
    $region11: #{tpu_custom_call.1} parent=1 // pred_check_branch
      %15 = sbr.rel (0) target = $region13
    $region12: #{tpu_custom_call.1} parent=1 // pred_region
      _
    $region13: #{tpu_custom_call.1} parent=1 // pred_fallthru
      _
    // Predicated region
    $region14: #{tpu_custom_call.1} parent=1 // pred_check
      _
    $region15: #{tpu_custom_call.1} parent=1 // pred_check_branch
      %17 = sbr.rel (0) target = $region17
    $region16: #{tpu_custom_call.1} parent=1 // pred_region
      _
    $region17: #{tpu_custom_call.1} parent=1 // pred_fallthru
      _
    %v19 = vld [vmem:[%s0] sm:$0xff]
    %v20 = vld [vmem:[%s0 + $0x8] sm:$0xff]
    %v21 = vld [vmem:[%s0 + $0x10] sm:$0xff]
    %v22 = vld [vmem:[%s0 + $0x18] sm:$0xff]
    %v23 = vld [vmem:[%s0 + $0x20] sm:$0xff]
    %v24 = vld [vmem:[%s0 + $0x28] sm:$0xff]
    %v25 = vld [vmem:[%s0 + $0x30] sm:$0xff]
    %v26 = vld [vmem:[%s0 + $0x38] sm:$0xff]
    %v27 = vld [vmem:[%s1] sm:$0xff]
    %v28 = vld [vmem:[%s1 + $0x8] sm:$0xff]
    %v29 = vld [vmem:[%s1 + $0x10] sm:$0xff]
    %v30 = vld [vmem:[%s1 + $0x18] sm:$0xff]
    %v31 = vld [vmem:[%s1 + $0x20] sm:$0xff]
    %v32 = vld [vmem:[%s1 + $0x28] sm:$0xff]
    %v33 = vld [vmem:[%s1 + $0x30] sm:$0xff]
    %v34 = vld [vmem:[%s1 + $0x38] sm:$0xff]
    %v35 = vld [vmem:[%s1 + $0x40] sm:$0xff]
    %v36 = vld [vmem:[%s1 + $0x48] sm:$0xff]
    %v37 = vld [vmem:[%s1 + $0x50] sm:$0xff]
    %v38 = vld [vmem:[%s1 + $0x58] sm:$0xff]
    %v39 = vld [vmem:[%s1 + $0x60] sm:$0xff]
    %v40 = vld [vmem:[%s1 + $0x68] sm:$0xff]
    %v41 = vld [vmem:[%s1 + $0x70] sm:$0xff]
    %v42 = vld [vmem:[%s1 + $0x78] sm:$0xff]
    %v43 = vld [vmem:[%s1 + $0x80] sm:$0xff]
    %v44 = vld [vmem:[%s1 + $0x88] sm:$0xff]
    %v45 = vld [vmem:[%s1 + $0x90] sm:$0xff]
    %v46 = vld [vmem:[%s1 + $0x98] sm:$0xff]
    %v47 = vld [vmem:[%s1 + $0xa0] sm:$0xff]
    %v48 = vld [vmem:[%s1 + $0xa8] sm:$0xff]
    %v49 = vld [vmem:[%s1 + $0xb0] sm:$0xff]
    %v50 = vld [vmem:[%s1 + $0xb8] sm:$0xff]
    %v51 = vld [vmem:[%s1 + $0xc0] sm:$0xff]
    %v52 = vld [vmem:[%s1 + $0xc8] sm:$0xff]
    %v53 = vld [vmem:[%s1 + $0xd0] sm:$0xff]
    %v54 = vld [vmem:[%s1 + $0xd8] sm:$0xff]
    %v55 = vld [vmem:[%s1 + $0xe0] sm:$0xff]
    %v56 = vld [vmem:[%s1 + $0xe8] sm:$0xff]
    %v57 = vld [vmem:[%s1 + $0xf0] sm:$0xff]
    %v58 = vld [vmem:[%s1 + $0xf8] sm:$0xff]
    %v67 = vunpack.c.l.b16 %v19
    %v68 = vunpack.c.h.b16 %v19
    %v69 = vunpack.c.l.b16 %v20
    %v70 = vunpack.c.h.b16 %v20
    %v71 = vunpack.c.l.b16 %v21
    %v72 = vunpack.c.h.b16 %v21
    %v73 = vunpack.c.l.b16 %v22
    %v74 = vunpack.c.h.b16 %v22
    %v75 = vunpack.c.l.b16 %v23
    %v76 = vunpack.c.h.b16 %v23
    %v77 = vunpack.c.l.b16 %v24
    %v78 = vunpack.c.h.b16 %v24
    %v79 = vunpack.c.l.b16 %v25
    %v80 = vunpack.c.h.b16 %v25
    %v81 = vunpack.c.l.b16 %v26
    %v82 = vunpack.c.h.b16 %v26
    %v83 = vpack.c.b16 %v69, %v67
    %v84 = vpack.c.b16 %v70, %v68
    %v85 = vpack.c.b16 %v73, %v71
    %v86 = vpack.c.b16 %v74, %v72
    %v87 = vpack.c.b16 %v77, %v75
    %v88 = vpack.c.b16 %v78, %v76
    %v89 = vpack.c.b16 %v81, %v79
    %v90 = vpack.c.b16 %v82, %v80
    %v131 = vunpack.c.l.b16 %v27
    %v132 = vunpack.c.h.b16 %v27
    %v133 = vunpack.c.l.b16 %v28
    %v134 = vunpack.c.h.b16 %v28
    %v135 = vunpack.c.l.b16 %v29
    %v136 = vunpack.c.h.b16 %v29
    %v137 = vunpack.c.l.b16 %v30
    %v138 = vunpack.c.h.b16 %v30
    %v139 = vunpack.c.l.b16 %v31
    %v140 = vunpack.c.h.b16 %v31
    %v141 = vunpack.c.l.b16 %v32
    %v142 = vunpack.c.h.b16 %v32
    %v143 = vunpack.c.l.b16 %v33
    %v144 = vunpack.c.h.b16 %v33
    %v145 = vunpack.c.l.b16 %v34
    %v146 = vunpack.c.h.b16 %v34
    %v147 = vunpack.c.l.b16 %v35
    %v148 = vunpack.c.h.b16 %v35
    %v149 = vunpack.c.l.b16 %v36
    %v150 = vunpack.c.h.b16 %v36
    %v151 = vunpack.c.l.b16 %v37
    %v152 = vunpack.c.h.b16 %v37
    %v153 = vunpack.c.l.b16 %v38
    %v154 = vunpack.c.h.b16 %v38
    %v155 = vunpack.c.l.b16 %v39
    %v156 = vunpack.c.h.b16 %v39
    %v157 = vunpack.c.l.b16 %v40
    %v158 = vunpack.c.h.b16 %v40
    %v159 = vunpack.c.l.b16 %v41
    %v160 = vunpack.c.h.b16 %v41
    %v161 = vunpack.c.l.b16 %v42
    %v162 = vunpack.c.h.b16 %v42
    %v163 = vunpack.c.l.b16 %v43
    %v164 = vunpack.c.h.b16 %v43
    %v165 = vunpack.c.l.b16 %v44
    %v166 = vunpack.c.h.b16 %v44
    %v167 = vunpack.c.l.b16 %v45
    %v168 = vunpack.c.h.b16 %v45
    %v169 = vunpack.c.l.b16 %v46
    %v170 = vunpack.c.h.b16 %v46
    %v171 = vunpack.c.l.b16 %v47
    %v172 = vunpack.c.h.b16 %v47
    %v173 = vunpack.c.l.b16 %v48
    %v174 = vunpack.c.h.b16 %v48
    %v175 = vunpack.c.l.b16 %v49
    %v176 = vunpack.c.h.b16 %v49
    %v177 = vunpack.c.l.b16 %v50
    %v178 = vunpack.c.h.b16 %v50
    %v179 = vunpack.c.l.b16 %v51
    %v180 = vunpack.c.h.b16 %v51
    %v181 = vunpack.c.l.b16 %v52
    %v182 = vunpack.c.h.b16 %v52
    %v183 = vunpack.c.l.b16 %v53
    %v184 = vunpack.c.h.b16 %v53
    %v185 = vunpack.c.l.b16 %v54
    %v186 = vunpack.c.h.b16 %v54
    %v187 = vunpack.c.l.b16 %v55
    %v188 = vunpack.c.h.b16 %v55
    %v189 = vunpack.c.l.b16 %v56
    %v190 = vunpack.c.h.b16 %v56
    %v191 = vunpack.c.l.b16 %v57
    %v192 = vunpack.c.h.b16 %v57
    %v193 = vunpack.c.l.b16 %v58
    %v194 = vunpack.c.h.b16 %v58
    %v195 = vpack.c.b16 %v133, %v131
    %v196 = vpack.c.b16 %v134, %v132
    %v197 = vpack.c.b16 %v137, %v135
    %v198 = vpack.c.b16 %v138, %v136
    %v199 = vpack.c.b16 %v141, %v139
    %v200 = vpack.c.b16 %v142, %v140
    %v201 = vpack.c.b16 %v145, %v143
    %v202 = vpack.c.b16 %v146, %v144
    %v203 = vpack.c.b16 %v149, %v147
    %v204 = vpack.c.b16 %v150, %v148
    %v205 = vpack.c.b16 %v153, %v151
    %v206 = vpack.c.b16 %v154, %v152
    %v207 = vpack.c.b16 %v157, %v155
    %v208 = vpack.c.b16 %v158, %v156
    %v209 = vpack.c.b16 %v161, %v159
    %v210 = vpack.c.b16 %v162, %v160
    %v211 = vpack.c.b16 %v165, %v163
    %v212 = vpack.c.b16 %v166, %v164
    %v213 = vpack.c.b16 %v169, %v167
    %v214 = vpack.c.b16 %v170, %v168
    %v215 = vpack.c.b16 %v173, %v171
    %v216 = vpack.c.b16 %v174, %v172
    %v217 = vpack.c.b16 %v177, %v175
    %v218 = vpack.c.b16 %v178, %v176
    %v219 = vpack.c.b16 %v181, %v179
    %v220 = vpack.c.b16 %v182, %v180
    %v221 = vpack.c.b16 %v185, %v183
    %v222 = vpack.c.b16 %v186, %v184
    %v223 = vpack.c.b16 %v189, %v187
    %v224 = vpack.c.b16 %v190, %v188
    %v225 = vpack.c.b16 %v193, %v191
    %v226 = vpack.c.b16 %v194, %v192
    %259 = vmatpush.bf16.msra.mxu0 %v209
    %260 = vmatpush.bf16.msra.mxu0 %v207
    %261 = vmatpush.bf16.msra.mxu0 %v205
    %262 = vmatpush.bf16.msra.mxu0 %v203
    %263 = vmatpush.bf16.msra.mxu0 %v201
    %264 = vmatpush.bf16.msra.mxu0 %v199
    %265 = vmatpush.bf16.msra.mxu0 %v197
    %266 = vmatpush.bf16.msra.mxu0 %v195
    %267 = vmatmul.bf16.gmra.mxu0 %v83
    %v268 = vpop.f32.mrf.mxu0
    %v269 = vadd.f32 0.0, %v268
    %v270 = vpop.f32.mrf.mxu0
    %v271 = vadd.f32 0.0, %v270
    %272 = vmatmul.bf16.gmra.mxu0 %v85
    %v273 = vpop.f32.mrf.mxu0
    %v274 = vadd.f32 0.0, %v273
    %v275 = vpop.f32.mrf.mxu0
    %v276 = vadd.f32 0.0, %v275
    %277 = vmatmul.bf16.gmra.mxu0 %v87
    %v278 = vpop.f32.mrf.mxu0
    %v279 = vadd.f32 0.0, %v278
    %v280 = vpop.f32.mrf.mxu0
    %v281 = vadd.f32 0.0, %v280
    %282 = vmatmul.bf16.gmra.mxu0 %v89
    %v283 = vpop.f32.mrf.mxu0
    %v284 = vadd.f32 0.0, %v283
    %v285 = vpop.f32.mrf.mxu0
    %v286 = vadd.f32 0.0, %v285
    %287 = vdwg.mxu0
    %288 = vmatpush.bf16.msra.mxu0 %v225
    %289 = vmatpush.bf16.msra.mxu0 %v223
    %290 = vmatpush.bf16.msra.mxu0 %v221
    %291 = vmatpush.bf16.msra.mxu0 %v219
    %292 = vmatpush.bf16.msra.mxu0 %v217
    %293 = vmatpush.bf16.msra.mxu0 %v215
    %294 = vmatpush.bf16.msra.mxu0 %v213
    %295 = vmatpush.bf16.msra.mxu0 %v211
    %296 = vmatmul.bf16.gmra.mxu0 %v84
    %v297 = vpop.f32.mrf.mxu0
    %v298 = vadd.f32 %v269, %v297
    %v299 = vpop.f32.mrf.mxu0
    %v300 = vadd.f32 %v271, %v299
    %301 = vmatmul.bf16.gmra.mxu0 %v86
    %v302 = vpop.f32.mrf.mxu0
    %v303 = vadd.f32 %v274, %v302
    %v304 = vpop.f32.mrf.mxu0
    %v305 = vadd.f32 %v276, %v304
    %306 = vmatmul.bf16.gmra.mxu0 %v88
    %v307 = vpop.f32.mrf.mxu0
    %v308 = vadd.f32 %v279, %v307
    %v309 = vpop.f32.mrf.mxu0
    %v310 = vadd.f32 %v281, %v309
    %311 = vmatmul.bf16.gmra.mxu0 %v90
    %v312 = vpop.f32.mrf.mxu0
    %v313 = vadd.f32 %v284, %v312
    %v314 = vpop.f32.mrf.mxu0
    %v315 = vadd.f32 %v286, %v314
    %316 = vdwg.mxu0
    %317 = vmatpush.bf16.msra.mxu0 %v210
    %318 = vmatpush.bf16.msra.mxu0 %v208
    %319 = vmatpush.bf16.msra.mxu0 %v206
    %320 = vmatpush.bf16.msra.mxu0 %v204
    %321 = vmatpush.bf16.msra.mxu0 %v202
    %322 = vmatpush.bf16.msra.mxu0 %v200
    %323 = vmatpush.bf16.msra.mxu0 %v198
    %324 = vmatpush.bf16.msra.mxu0 %v196
    %325 = vmatmul.bf16.gmra.mxu0 %v83
    %v326 = vpop.f32.mrf.mxu0
    %v327 = vadd.f32 0.0, %v326
    %v328 = vpop.f32.mrf.mxu0
    %v329 = vadd.f32 0.0, %v328
    %330 = vmatmul.bf16.gmra.mxu0 %v85
    %v331 = vpop.f32.mrf.mxu0
    %v332 = vadd.f32 0.0, %v331
    %v333 = vpop.f32.mrf.mxu0
    %v334 = vadd.f32 0.0, %v333
    %335 = vmatmul.bf16.gmra.mxu0 %v87
    %v336 = vpop.f32.mrf.mxu0
    %v337 = vadd.f32 0.0, %v336
    %v338 = vpop.f32.mrf.mxu0
    %v339 = vadd.f32 0.0, %v338
    %340 = vmatmul.bf16.gmra.mxu0 %v89
    %v341 = vpop.f32.mrf.mxu0
    %v342 = vadd.f32 0.0, %v341
    %v343 = vpop.f32.mrf.mxu0
    %v344 = vadd.f32 0.0, %v343
    %345 = vdwg.mxu0
    %346 = vmatpush.bf16.msra.mxu0 %v226
    %347 = vmatpush.bf16.msra.mxu0 %v224
    %348 = vmatpush.bf16.msra.mxu0 %v222
    %349 = vmatpush.bf16.msra.mxu0 %v220
    %350 = vmatpush.bf16.msra.mxu0 %v218
    %351 = vmatpush.bf16.msra.mxu0 %v216
    %352 = vmatpush.bf16.msra.mxu0 %v214
    %353 = vmatpush.bf16.msra.mxu0 %v212
    %354 = vmatmul.bf16.gmra.mxu0 %v84
    %v355 = vpop.f32.mrf.mxu0
    %v356 = vadd.f32 %v327, %v355
    %v357 = vpop.f32.mrf.mxu0
    %v358 = vadd.f32 %v329, %v357
    %359 = vmatmul.bf16.gmra.mxu0 %v86
    %v360 = vpop.f32.mrf.mxu0
    %v361 = vadd.f32 %v332, %v360
    %v362 = vpop.f32.mrf.mxu0
    %v363 = vadd.f32 %v334, %v362
    %364 = vmatmul.bf16.gmra.mxu0 %v88
    %v365 = vpop.f32.mrf.mxu0
    %v366 = vadd.f32 %v337, %v365
    %v367 = vpop.f32.mrf.mxu0
    %v368 = vadd.f32 %v339, %v367
    %369 = vmatmul.bf16.gmra.mxu0 %v90
    %v370 = vpop.f32.mrf.mxu0
    %v371 = vadd.f32 %v342, %v370
    %v372 = vpop.f32.mrf.mxu0
    %v373 = vadd.f32 %v344, %v372
    %374 = vdwg.mxu0
    %v375 = vpack.c.bf16 %v300, %v298
    %v376 = vpack.c.bf16 %v305, %v303
    %v377 = vpack.c.bf16 %v310, %v308
    %v378 = vpack.c.bf16 %v315, %v313
    %v379 = vpack.c.bf16 %v358, %v356
    %v380 = vpack.c.bf16 %v363, %v361
    %v381 = vpack.c.bf16 %v368, %v366
    %v382 = vpack.c.bf16 %v373, %v371
    %v383 = vld [vmem:[%s2] sm:$0xff]
    %v384 = vld [vmem:[%s2 + $0x8] sm:$0xff]
    %v385 = vld [vmem:[%s2 + $0x10] sm:$0xff]
    %v386 = vld [vmem:[%s2 + $0x18] sm:$0xff]
    %v387 = vld [vmem:[%s2 + $0x20] sm:$0xff]
    %v388 = vld [vmem:[%s2 + $0x28] sm:$0xff]
    %v389 = vld [vmem:[%s2 + $0x30] sm:$0xff]
    %v390 = vld [vmem:[%s2 + $0x38] sm:$0xff]
    %395 = vrot.lane.b32.xlu0 %v379, 112
    %v396 = vpop.permute.xlu0 %395
    %397 = vrot.lane.b32.xlu0 %v380, 112
    %v398 = vpop.permute.xlu0 %397
    %399 = vrot.lane.b32.xlu0 %v381, 112
    %v400 = vpop.permute.xlu0 %399
    %401 = vrot.lane.b32.xlu0 %v382, 112
    %v402 = vpop.permute.xlu0 %401
    %vm403 = vcmask 130048
    %v405 = vsel %vm403, %v379, 0
    %v408 = vsel %vm403, %v380, 0
    %v411 = vsel %vm403, %v381, 0
    %v414 = vsel %vm403, %v382, 0
    %v417 = vsel %vm403, %v396, 0
    %v420 = vsel %vm403, %v398, 0
    %v423 = vsel %vm403, %v400, 0
    %v426 = vsel %vm403, %v402, 0
    %428 = vmatpush.bf16.xpose.msra.mxu0 0
    %429 = vmatpush.bf16.xpose.msra.mxu0 0
    %430 = vmatpush.bf16.xpose.msra.mxu0 0
    %431 = vmatpush.bf16.xpose.msra.mxu0 0
    %432 = vmatpush.bf16.xpose.msra.mxu0 %v426
    %433 = vmatpush.bf16.xpose.msra.mxu0 %v423
    %434 = vmatpush.bf16.xpose.msra.mxu0 %v420
    %435 = vmatpush.bf16.xpose.msra.mxu0 %v417
    %436 = vmatmul.bf16.gmra.mxu0 %v405
    %v437 = vpop.f32.mrf.mxu0
    %v438 = vadd.f32 %v383, %v437
    %v439 = vpop.f32.mrf.mxu0
    %v440 = vadd.f32 %v384, %v439
    %441 = vmatmul.bf16.gmra.mxu0 %v408
    %v442 = vpop.f32.mrf.mxu0
    %v443 = vadd.f32 %v385, %v442
    %v444 = vpop.f32.mrf.mxu0
    %v445 = vadd.f32 %v386, %v444
    %446 = vmatmul.bf16.gmra.mxu0 %v411
    %v447 = vpop.f32.mrf.mxu0
    %v448 = vadd.f32 %v387, %v447
    %v449 = vpop.f32.mrf.mxu0
    %v450 = vadd.f32 %v388, %v449
    %451 = vmatmul.bf16.gmra.mxu0 %v414
    %v452 = vpop.f32.mrf.mxu0
    %v453 = vadd.f32 %v389, %v452
    %v454 = vpop.f32.mrf.mxu0
    %v455 = vadd.f32 %v390, %v454
    %456 = vdwg.mxu0
    %vm457 = vcmask 523264
    %v458 = vsel %vm457, %v438, -inf
    %459 = vmax.xlane.f32.xlu0 %v458
    %v460 = vpop.xlane.xlu0 %459
    %v461 = vsel %vm457, %v440, -inf
    %462 = vmax.xlane.f32.xlu0 %v461
    %v463 = vpop.xlane.xlu0 %462
    %v464 = vsel %vm457, %v443, -inf
    %465 = vmax.xlane.f32.xlu0 %v464
    %v466 = vpop.xlane.xlu0 %465
    %v467 = vsel %vm457, %v445, -inf
    %468 = vmax.xlane.f32.xlu0 %v467
    %v469 = vpop.xlane.xlu0 %468
    %v470 = vsel %vm457, %v448, -inf
    %471 = vmax.xlane.f32.xlu0 %v470
    %v472 = vpop.xlane.xlu0 %471
    %v473 = vsel %vm457, %v450, -inf
    %474 = vmax.xlane.f32.xlu0 %v473
    %v475 = vpop.xlane.xlu0 %474
    %v476 = vsel %vm457, %v453, -inf
    %477 = vmax.xlane.f32.xlu0 %v476
    %v478 = vpop.xlane.xlu0 %477
    %v479 = vsel %vm457, %v455, -inf
    %480 = vmax.xlane.f32.xlu0 %v479
    %v481 = vpop.xlane.xlu0 %480
    %v482 = vsub.f32 %v438, %v460
    %v483 = vsub.f32 %v440, %v463
    %v484 = vsub.f32 %v443, %v466
    %v485 = vsub.f32 %v445, %v469
    %v486 = vsub.f32 %v448, %v472
    %v487 = vsub.f32 %v450, %v475
    %v488 = vsub.f32 %v453, %v478
    %v489 = vsub.f32 %v455, %v481
    %v490 = vmul.f32 %v482, 1.442695
    %v491 = vpow.pop %v490
    %v492 = vmul.f32 %v483, 1.442695
    %v493 = vpow.pop %v492
    %v494 = vmul.f32 %v484, 1.442695
    %v495 = vpow.pop %v494
    %v496 = vmul.f32 %v485, 1.442695
    %v497 = vpow.pop %v496
    %v498 = vmul.f32 %v486, 1.442695
    %v499 = vpow.pop %v498
    %v500 = vmul.f32 %v487, 1.442695
    %v501 = vpow.pop %v500
    %v502 = vmul.f32 %v488, 1.442695
    %v503 = vpow.pop %v502
    %v504 = vmul.f32 %v489, 1.442695
    %v505 = vpow.pop %v504
    %v506 = vsel %vm457, %v491, 0.0
    %507 = vadd.xlane.f32.xlu0 %v506
    %v508 = vpop.xlane.xlu0 %507
    %v509 = vsel %vm457, %v493, 0.0
    %510 = vadd.xlane.f32.xlu0 %v509
    %v511 = vpop.xlane.xlu0 %510
    %v512 = vsel %vm457, %v495, 0.0
    %513 = vadd.xlane.f32.xlu0 %v512
    %v514 = vpop.xlane.xlu0 %513
    %v515 = vsel %vm457, %v497, 0.0
    %516 = vadd.xlane.f32.xlu0 %v515
    %v517 = vpop.xlane.xlu0 %516
    %v518 = vsel %vm457, %v499, 0.0
    %519 = vadd.xlane.f32.xlu0 %v518
    %v520 = vpop.xlane.xlu0 %519
    %v521 = vsel %vm457, %v501, 0.0
    %522 = vadd.xlane.f32.xlu0 %v521
    %v523 = vpop.xlane.xlu0 %522
    %v524 = vsel %vm457, %v503, 0.0
    %525 = vadd.xlane.f32.xlu0 %v524
    %v526 = vpop.xlane.xlu0 %525
    %v527 = vsel %vm457, %v505, 0.0
    %528 = vadd.xlane.f32.xlu0 %v527
    %v529 = vpop.xlane.xlu0 %528
    %v530 = vrcp.pop %v508
    %v531 = vrcp.pop %v511
    %v532 = vrcp.pop %v514
    %v533 = vrcp.pop %v517
    %v534 = vrcp.pop %v520
    %v535 = vrcp.pop %v523
    %v536 = vrcp.pop %v526
    %v537 = vrcp.pop %v529
    %v538 = vmul.f32 %v491, %v530
    %v539 = vmul.f32 %v493, %v531
    %v540 = vmul.f32 %v495, %v532
    %v541 = vmul.f32 %v497, %v533
    %v542 = vmul.f32 %v499, %v534
    %v543 = vmul.f32 %v501, %v535
    %v544 = vmul.f32 %v503, %v536
    %v545 = vmul.f32 %v505, %v537
    %v546 = vpack.c.bf16 %v539, %v538
    %v547 = vpack.c.bf16 %v541, %v540
    %v548 = vpack.c.bf16 %v543, %v542
    %v549 = vpack.c.bf16 %v545, %v544
    %v551 = vsel %vm457, %v546, 0
    %v554 = vsel %vm457, %v547, 0
    %v557 = vsel %vm457, %v548, 0
    %v560 = vsel %vm457, %v549, 0
    %562 = vmatpush.bf16.msra.mxu0 0
    %563 = vmatpush.bf16.msra.mxu0 0
    %564 = vmatpush.bf16.msra.mxu0 0
    %565 = vmatpush.bf16.msra.mxu0 0
    %566 = vmatpush.bf16.msra.mxu0 %v378
    %567 = vmatpush.bf16.msra.mxu0 %v377
    %568 = vmatpush.bf16.msra.mxu0 %v376
    %569 = vmatpush.bf16.msra.mxu0 %v375
    %570 = vmatmul.bf16.gmra.mxu0 %v551
    %v571 = vpop.f32.mrf.mxu0
    %v572 = vadd.f32 0.0, %v571
    %v573 = vpop.f32.mrf.mxu0
    %v574 = vadd.f32 0.0, %v573
    %575 = vmatmul.bf16.gmra.mxu0 %v554
    %v576 = vpop.f32.mrf.mxu0
    %v577 = vadd.f32 0.0, %v576
    %v578 = vpop.f32.mrf.mxu0
    %v579 = vadd.f32 0.0, %v578
    %580 = vmatmul.bf16.gmra.mxu0 %v557
    %v581 = vpop.f32.mrf.mxu0
    %v582 = vadd.f32 0.0, %v581
    %v583 = vpop.f32.mrf.mxu0
    %v584 = vadd.f32 0.0, %v583
    %585 = vmatmul.bf16.gmra.mxu0 %v560
    %v586 = vpop.f32.mrf.mxu0
    %v587 = vadd.f32 0.0, %v586
    %v588 = vpop.f32.mrf.mxu0
    %v589 = vadd.f32 0.0, %v588
    %590 = vdwg.mxu0
    %v591 = vld [vmem:[%s3] sm:$0x1]
    %v593 = vperm.slane %v591, 0
    %v595 = vadd.f32 %v593, %v572
    %v596 = vadd.f32 %v593, %v574
    %v597 = vadd.f32 %v595, %v577
    %v598 = vadd.f32 %v596, %v579
    %v599 = vadd.f32 %v597, %v582
    %v600 = vadd.f32 %v598, %v584
    %v601 = vadd.f32 %v599, %v587
    %v602 = vadd.f32 %v600, %v589
    %603 = vst [vmem:[#allocation2] sm:$0xff] %v601
    %604 = vst [vmem:[#allocation2 + $0x8] sm:$0xff] %v602
    // Predicated region
    $region18: #{tpu_custom_call.1} parent=1 // pred_check
      _
    $region19: #{tpu_custom_call.1} parent=1 // pred_check_branch
      %606 = sbr.rel (0) target = $region21
    $region20: #{tpu_custom_call.1} parent=1 // pred_region
      %608 = vsyncadd [#allocation3], 0
      %s609 = sshll.u32 [#allocation2], 4
      %s610 = int_to_ptr.vmem [resolvable:$true] %s609
      %s611 = sshll.u32 %s4, 4
      %s612 = int_to_ptr.hbm [resolvable:$true] %s611
      %617 = dma.vmem_to_hbm [thread:$0]  %s610, 256, %s612, [#allocation3], 128, 128, 8
    $region21: #{tpu_custom_call.1} parent=1 // pred_fallthru
      _
    // Predicated region
    $region22: #{tpu_custom_call.1} parent=1 // pred_check
      _
    $region23: #{tpu_custom_call.1} parent=1 // pred_check_branch
      %619 = sbr.rel (0) target = $region25
    $region24: #{tpu_custom_call.1} parent=1 // pred_region
      %621 = dma.done [#allocation3], 256
    $region25: #{tpu_custom_call.1} parent=1 // pred_fallthru
      _
    %622 = vsyncpa [#allocation3], 1

</llo_original>
